<compile_context>
chip_gen: v5e
topology: v5e:2x2
jax: 0.10.0
libtpu: 0.0.40
codegen_flags: <defaults>
</compile_context>

<pallas_src>
import functools

import jax
import jax.numpy as jnp
from jax.experimental import pallas as pl
from jax.experimental.pallas import tpu as pltpu


# ----------------------------------------------------------------------------
# Kernel: one batch tile of the fused 3-layer MLP (feature-major pipeline).
# ----------------------------------------------------------------------------
def _critic_kernel(use_tanh, bf16_act, x_ref, w1_ref, b1_ref, w2_ref, b2_ref,
                   w3_ref, b3_ref, out_ref):
    """
    x_ref  : (TB, obs)          input rows (f32 or bf16)
    w1_ref : (H1, obs)  bf16    l1 weight (PyTorch (out, in) layout)
    b1_ref : (H1, 1)    f32
    w2_ref : (H2, H1)   bf16
    b2_ref : (H2, 1)    f32
    w3_ref : (1, H2)    bf16    value-head row
    b3_ref : (1,)       f32     SMEM scalar
    out_ref: (1, TB)    f32     lane-dense value row
    """
    act_dtype = jnp.bfloat16 if bf16_act else jnp.float32

    def act(pre):
        pre = pre.astype(act_dtype)                 # bf16 EUP path on v6e/v7x
        a = jnp.tanh(pre) if use_tanh else jnp.maximum(pre, 0)
        return a.astype(jnp.bfloat16)               # MXU input for next layer

    # Transpose only the small (TB, obs) slab; the rest of the pipeline stays
    # feature-major so the value row is produced lane-dense with no further
    # transposes.  (no-op cast if x already arrives as f32 / bf16.)
    xT = x_ref[...].astype(jnp.float32).T.astype(jnp.bfloat16)   # (obs, TB)

    # layer 1: (H1, obs) @ (obs, TB) on the MXU, f32 accumulation
    h1 = jnp.dot(w1_ref[...], xT, preferred_element_type=jnp.float32)
    h1 = act(h1 + b1_ref[...])

    # layer 2: (H2, H1) @ (H1, TB)
    h2 = jnp.dot(w2_ref[...], h1, preferred_element_type=jnp.float32)
    h2 = act(h2 + b2_ref[...])

    # value head: (1, H2) @ (H2, TB) -> (1, TB) lane-dense row
    v = jnp.dot(w3_ref[...], h2, preferred_element_type=jnp.float32)
    out_ref[...] = (v + b3_ref[0]).astype(out_ref.dtype)


def _pick_batch_tile(batch, block_b):
    """Lane-aligned (x128) batch tile, large enough to amortize per-grid-step
    overhead, but split so >=2 tiles exist when the batch allows it (v7x has
    two TensorCores sharing the 'parallel' grid axis)."""
    block_b = max(128, (block_b // 128) * 128)
    if batch <= block_b:
        if batch >= 256:
            return max(128, ((batch // 2) // 128) * 128)
        return batch          # single full-extent tile (covers whole array)
    return block_b


def critic_forward(x, params, *, use_tanh=True, block_b=1024, bf16_act=None):
    """Critic forward pass as a batch-tiled Pallas TPU kernel.

    x      : (batch, obs_dim), f32 or bf16 (bf16 halves the dominant HBM stream)
    params : dict with w1 (obs,h1), b1 (1,h1), w2 (h1,h2), b2 (1,h2),
             w3 (h2,1), b3 (1,1)
    returns: (batch, 1) float32
    """
    batch, obs_dim = x.shape
    hidden_1 = params["w1"].shape[1]
    hidden_2 = params["w2"].shape[1]

    # bf16 bias+tanh uses the bf16 VPU/EUP on v6e/v7x; keep f32 on v5e & older.
    if bf16_act is None:
        kind = jax.devices()[0].device_kind.lower()
        bf16_act = not any(t in kind for t in ("v2", "v3", "v4", "v5"))

    tb = _pick_batch_tile(batch, block_b)
    num_tiles = pl.cdiv(batch, tb)
    # Ragged last tile: Pallas boundary blocks handle it (padded rows stay in
    # their own lanes; OOB output lanes are masked) -> no jnp.pad round-trip.

    # Weights feature-major (PyTorch (out, in) layout) in bf16 for the MXU;
    # biases stay f32 columns; b3 is a single SMEM scalar.
    w1t = params["w1"].T.astype(jnp.bfloat16)                 # (H1, obs)
    w2t = params["w2"].T.astype(jnp.bfloat16)                 # (H2, H1)
    w3r = params["w3"].reshape(1, hidden_2).astype(jnp.bfloat16)
    b1c = params["b1"].reshape(hidden_1, 1).astype(jnp.float32)
    b2c = params["b2"].reshape(hidden_2, 1).astype(jnp.float32)
    b3s = params["b3"].reshape(1).astype(jnp.float32)

    flops = 2 * batch * (obs_dim * hidden_1 + hidden_1 * hidden_2 + hidden_2)
    transcendentals = batch * (hidden_1 + hidden_2) if use_tanh else 0
    bytes_accessed = (x.size * x.dtype.itemsize + batch * 4
                      + 2 * (w1t.size + w2t.size + w3r.size)
                      + 4 * (hidden_1 + hidden_2 + 1))

    kernel = functools.partial(_critic_kernel, use_tanh, bf16_act)
    out = pl.pallas_call(
        kernel,
        out_shape=jax.ShapeDtypeStruct((1, batch), jnp.float32),
        grid=(num_tiles,),
        in_specs=[
            pl.BlockSpec((tb, obs_dim), lambda i: (i, 0)),          # x (streamed)
            pl.BlockSpec((hidden_1, obs_dim), lambda i: (0, 0)),    # w1^T (resident)
            pl.BlockSpec((hidden_1, 1), lambda i: (0, 0)),          # b1
            pl.BlockSpec((hidden_2, hidden_1), lambda i: (0, 0)),   # w2^T
            pl.BlockSpec((hidden_2, 1), lambda i: (0, 0)),          # b2
            pl.BlockSpec((1, hidden_2), lambda i: (0, 0)),          # w3 row
            pl.BlockSpec(memory_space=pltpu.MemorySpace.SMEM),      # b3 scalar
        ],
        out_specs=pl.BlockSpec((1, tb), lambda i: (0, i)),          # lane-dense values
        compiler_params=pltpu.CompilerParams(
            dimension_semantics=("parallel",),
            vmem_limit_bytes=32 * 1024 * 1024),
        cost_estimate=pl.CostEstimate(
            flops=int(flops),
            transcendentals=int(transcendentals),
            bytes_accessed=int(bytes_accessed)),
    )(x, w1t, b1c, w2t, b2c, w3r, b3s)

    # (1, batch) lane-dense row -> (batch, 1) column (matches nn.Linear output).
    return out.reshape(batch, 1)


# ----------------------------------------------------------------------------
# Deterministic parameter initialization (orthogonal weight gain=1.0, bias=0),
# mirroring `orthogonal_init` from the PyTorch module.
# ----------------------------------------------------------------------------
def _orthogonal(key, shape, gain=1.0, dtype=jnp.float32):
    rows, cols = shape
    flipped = rows < cols
    mat_shape = (cols, rows) if flipped else (rows, cols)
    a = jax.random.normal(key, mat_shape, dtype=jnp.float32)
    q, r = jnp.linalg.qr(a)
    q = q * jnp.where(jnp.diagonal(r) >= 0, 1.0, -1.0)
    if flipped:
        q = q.T
    return (gain * q).astype(dtype)


def init_critic_params(key, obs_dim, hidden_1=128, hidden_2=128):
    k1, k2, k3 = jax.random.split(key, 3)
    return {
        "w1": _orthogonal(k1, (obs_dim, hidden_1)),
        "b1": jnp.zeros((1, hidden_1), jnp.float32),
        "w2": _orthogonal(k2, (hidden_1, hidden_2)),
        "b2": jnp.zeros((1, hidden_2), jnp.float32),
        "w3": _orthogonal(k3, (hidden_2, 1)),
        "b3": jnp.zeros((1, 1), jnp.float32),
    }


# Pure-JAX references for correctness checking.
def critic_reference(x, params, *, use_tanh=True):
    act = jnp.tanh if use_tanh else jax.nn.relu
    h = act(x @ params["w1"] + params["b1"])
    h = act(h @ params["w2"] + params["b2"])
    return h @ params["w3"] + params["b3"]


def critic_reference_bf16(x, params, *, use_tanh=True):
    # Emulates the kernel's bf16 MXU inputs / f32 accumulation (f32 activations).
    act = jnp.tanh if use_tanh else jax.nn.relu
    bf = lambda a: a.astype(jnp.bfloat16).astype(jnp.float32)
    h = act(bf(x) @ bf(params["w1"]) + params["b1"])
    h = act(bf(h) @ bf(params["w2"]) + params["b2"])
    return bf(h) @ bf(params["w3"]) + params["b3"]


if __name__ == "__main__":
    key = jax.random.PRNGKey(0)
    k_param, k_x1, k_x2 = jax.random.split(key, 3)

    obs_dim, hidden_1, hidden_2 = 16, 128, 128
    params = init_critic_params(k_param, obs_dim, hidden_1, hidden_2)

    # --- small single-tile batch, f32 activations (tight numeric check) ------
    batch1 = 40
    x1 = jax.random.normal(k_x1, (batch1, obs_dim), dtype=jnp.float32)
    ref1_f32 = critic_reference(x1, params, use_tanh=True)
    ref1_bf = critic_reference_bf16(x1, params, use_tanh=True)

    v1 = jax.block_until_ready(
        critic_forward(x1, params, use_tanh=True, bf16_act=False))
    assert v1.shape == (batch1, 1), v1.shape
    assert jnp.allclose(v1, ref1_bf, atol=1e-2, rtol=1e-2), (
        float(jnp.max(jnp.abs(v1 - ref1_bf))))
    assert jnp.allclose(v1, ref1_f32, atol=5e-2, rtol=5e-2), (
        float(jnp.max(jnp.abs(v1 - ref1_f32))))

    # --- multi-tile grid with ragged last tile (grid=3: 128,128,44 rows),
    #     bf16 x streaming and bf16 activations (loose numeric check) ---------
    batch2 = 300
    x2 = jax.random.normal(k_x2, (batch2, obs_dim), dtype=jnp.float32)
    ref2_bf = critic_reference_bf16(x2, params, use_tanh=True)

    v2 = jax.block_until_ready(
        critic_forward(x2.astype(jnp.bfloat16), params, use_tanh=True,
                       block_b=128, bf16_act=True))
    assert v2.shape == (batch2, 1), v2.shape
    assert jnp.allclose(v2, ref2_bf, atol=1e-1, rtol=1e-1), (
        float(jnp.max(jnp.abs(v2 - ref2_bf))))

    # --- default path (auto per-chip activation dtype, default tile size) ----
    v3 = jax.block_until_ready(critic_forward(x1, params, use_tanh=True))
    assert v3.shape == (batch1, 1), v3.shape
    assert jnp.allclose(v3, ref1_f32, atol=1e-1, rtol=1e-1), (
        float(jnp.max(jnp.abs(v3 - ref1_f32))))

    print("KERNEL_OK")
</pallas_src>

<mosaic_0001>
module attributes {stable_mosaic.version = 11 : i64} {
  func.func @_critic_kernel(%arg0: i32, %arg1: memref<40x16xf32, #tpu.memory_space<vmem>>, %arg2: memref<128x16xbf16, #tpu.memory_space<vmem>>, %arg3: memref<128x1xf32, #tpu.memory_space<vmem>>, %arg4: memref<128x128xbf16, #tpu.memory_space<vmem>>, %arg5: memref<128x1xf32, #tpu.memory_space<vmem>>, %arg6: memref<1x128xbf16, #tpu.memory_space<vmem>>, %arg7: memref<1xf32, #tpu.memory_space<smem>>, %arg8: memref<1x40xf32, #tpu.memory_space<vmem>>) attributes {dimension_semantics = [#tpu.dimension_semantics<parallel>], iteration_bounds = array<i64: 1>, scalar_prefetch = 0 : i64, scratch_operands = 0 : i64, tpu.core_type = #tpu.core_type<tc>, window_params = [{transform_indices = @transform_0, window_bounds = array<i64: 40, 16>}, {pipeline_mode = #tpu.pipeline_mode<synchronous>, transform_indices = @transform_1, window_bounds = array<i64: 128, 16>}, {pipeline_mode = #tpu.pipeline_mode<synchronous>, transform_indices = @transform_2, window_bounds = array<i64: 128, 1>}, {pipeline_mode = #tpu.pipeline_mode<synchronous>, transform_indices = @transform_3, window_bounds = array<i64: 128, 128>}, {pipeline_mode = #tpu.pipeline_mode<synchronous>, transform_indices = @transform_4, window_bounds = array<i64: 128, 1>}, {pipeline_mode = #tpu.pipeline_mode<synchronous>, transform_indices = @transform_5, window_bounds = array<i64: 1, 128>}, {transform_indices = @transform_6, window_bounds = array<i64: 1>}, {transform_indices = @transform_7, window_bounds = array<i64: 1, 40>}]} {
    %c0 = arith.constant 0 : index
    %c0_0 = arith.constant 0 : index
    %0 = vector.load %arg1[%c0, %c0_0] : memref<40x16xf32, #tpu.memory_space<vmem>>, vector<40x16xf32>
    %1 = tpu.transpose %0, [1, 0] : vector<40x16xf32> -> vector<16x40xf32>
    %2 = arith.truncf %1 : vector<16x40xf32> to vector<16x40xbf16>
    %c0_1 = arith.constant 0 : index
    %c0_2 = arith.constant 0 : index
    %3 = vector.load %arg2[%c0_1, %c0_2] : memref<128x16xbf16, #tpu.memory_space<vmem>>, vector<128x16xbf16>
    %cst = arith.constant dense<0.000000e+00> : vector<128x40xf32>
    %4 = tpu.matmul %3, %2, %cst {dimension_numbers = #tpu.dot_dimension_numbers<[1], [0], [0], [1], [0, 0, 1, 1], [], []>} : vector<128x16xbf16>, vector<16x40xbf16>, vector<128x40xf32> -> vector<128x40xf32>
    %c0_3 = arith.constant 0 : index
    %c0_4 = arith.constant 0 : index
    %5 = vector.load %arg3[%c0_3, %c0_4] : memref<128x1xf32, #tpu.memory_space<vmem>>, vector<128x1xf32>
    %6 = vector.broadcast %5 : vector<128x1xf32> to vector<128x40xf32>
    %7 = arith.addf %4, %6 : vector<128x40xf32>
    %8 = math.tanh %7 : vector<128x40xf32>
    %9 = arith.truncf %8 : vector<128x40xf32> to vector<128x40xbf16>
    %c0_5 = arith.constant 0 : index
    %c0_6 = arith.constant 0 : index
    %10 = vector.load %arg4[%c0_5, %c0_6] : memref<128x128xbf16, #tpu.memory_space<vmem>>, vector<128x128xbf16>
    %cst_7 = arith.constant dense<0.000000e+00> : vector<128x40xf32>
    %11 = tpu.matmul %10, %9, %cst_7 {dimension_numbers = #tpu.dot_dimension_numbers<[1], [0], [0], [1], [0, 0, 1, 1], [], []>} : vector<128x128xbf16>, vector<128x40xbf16>, vector<128x40xf32> -> vector<128x40xf32>
    %c0_8 = arith.constant 0 : index
    %c0_9 = arith.constant 0 : index
    %12 = vector.load %arg5[%c0_8, %c0_9] : memref<128x1xf32, #tpu.memory_space<vmem>>, vector<128x1xf32>
    %13 = vector.broadcast %12 : vector<128x1xf32> to vector<128x40xf32>
    %14 = arith.addf %11, %13 : vector<128x40xf32>
    %15 = math.tanh %14 : vector<128x40xf32>
    %16 = arith.truncf %15 : vector<128x40xf32> to vector<128x40xbf16>
    %c0_10 = arith.constant 0 : index
    %c0_11 = arith.constant 0 : index
    %17 = vector.load %arg6[%c0_10, %c0_11] : memref<1x128xbf16, #tpu.memory_space<vmem>>, vector<1x128xbf16>
    %cst_12 = arith.constant dense<0.000000e+00> : vector<1x40xf32>
    %18 = tpu.matmul %17, %16, %cst_12 {dimension_numbers = #tpu.dot_dimension_numbers<[1], [0], [0], [1], [0, 0, 1, 1], [], []>} : vector<1x128xbf16>, vector<128x40xbf16>, vector<1x40xf32> -> vector<1x40xf32>
    %c0_13 = arith.constant 0 : index
    %19 = memref.load %arg7[%c0_13] : memref<1xf32, #tpu.memory_space<smem>>
    %20 = vector.broadcast %19 : f32 to vector<1x40xf32>
    %21 = arith.addf %18, %20 : vector<1x40xf32>
    %c0_14 = arith.constant 0 : index
    %c0_15 = arith.constant 0 : index
    %22 = vector.load %arg8[%c0_14, %c0_15] : memref<1x40xf32, #tpu.memory_space<vmem>>, vector<1x40xf32>
    tpu.vector_store %arg8[%c0_14, %c0_15], %21 {strides = array<i32>} : memref<1x40xf32, #tpu.memory_space<vmem>>, vector<1x40xf32>,
    return
  }
  func.func @transform_0(%arg0: i32) -> (i32, i32) {
    %c0_i32 = arith.constant 0 : i32
    %c0_i32_0 = arith.constant 0 : i32
    return %arg0, %c0_i32 : i32, i32
  }
  func.func @transform_1(%arg0: i32) -> (i32, i32) {
    %c0_i32 = arith.constant 0 : i32
    %c0_i32_0 = arith.constant 0 : i32
    %c0_i32_1 = arith.constant 0 : i32
    return %c0_i32, %c0_i32_0 : i32, i32
  }
  func.func @transform_2(%arg0: i32) -> (i32, i32) {
    %c0_i32 = arith.constant 0 : i32
    %c0_i32_0 = arith.constant 0 : i32
    %c0_i32_1 = arith.constant 0 : i32
    return %c0_i32, %c0_i32_0 : i32, i32
  }
  func.func @transform_3(%arg0: i32) -> (i32, i32) {
    %c0_i32 = arith.constant 0 : i32
    %c0_i32_0 = arith.constant 0 : i32
    %c0_i32_1 = arith.constant 0 : i32
    return %c0_i32, %c0_i32_0 : i32, i32
  }
  func.func @transform_4(%arg0: i32) -> (i32, i32) {
    %c0_i32 = arith.constant 0 : i32
    %c0_i32_0 = arith.constant 0 : i32
    %c0_i32_1 = arith.constant 0 : i32
    return %c0_i32, %c0_i32_0 : i32, i32
  }
  func.func @transform_5(%arg0: i32) -> (i32, i32) {
    %c0_i32 = arith.constant 0 : i32
    %c0_i32_0 = arith.constant 0 : i32
    %c0_i32_1 = arith.constant 0 : i32
    return %c0_i32, %c0_i32_0 : i32, i32
  }
  func.func @transform_6(%arg0: i32) -> i32 {
    %c0_i32 = arith.constant 0 : i32
    %c0_i32_0 = arith.constant 0 : i32
    return %c0_i32 : i32
  }
  func.func @transform_7(%arg0: i32) -> (i32, i32) {
    %c0_i32 = arith.constant 0 : i32
    %c0_i32_0 = arith.constant 0 : i32
    return %c0_i32, %arg0 : i32, i32
  }
}

</mosaic_0001>

<llo_original>
// kernel: tpu_custom_call.1
$region0: #{tpu_custom_call.1}
  #allocation0 [shape = 'u32[]', space=smem, size = 0x4, offset = 0x4, fixed_abs, tag = 'smem constant byte address 0x4 - core index']
  #allocation1 [shape = 'u32[72,128]{1,0:T(1,128)}', space=vmem, size = 0x9000, scoped, tag = 'internal scratch']
  #allocation2 [shape = 'f32[1]{0:T(128)S(6)}', space=smem, size = 0x200, scoped, tag = 'scoped memory for tpu_custom_call.1']
  %s0 = inlined_call_operand.vmem [shape: f32[40,16], index: 0, kind: input, shape index: {}]
  %s1 = inlined_call_operand.vmem [shape: bf16[128,16], index: 1, kind: input, shape index: {}]
  %s2 = inlined_call_operand.vmem [shape: f32[128,1], index: 2, kind: input, shape index: {}]
  %s3 = inlined_call_operand.vmem [shape: bf16[128,128], index: 3, kind: input, shape index: {}]
  %s4 = inlined_call_operand.vmem [shape: f32[128,1], index: 4, kind: input, shape index: {}]
  %s5 = inlined_call_operand.vmem [shape: bf16[1,128], index: 5, kind: input, shape index: {}]
  %s6 = inlined_call_operand.<no memory space> [shape: f32[1], index: 6, kind: input, shape index: {}]
  %s7 = inlined_call_operand.hbm [shape: f32[1,40], index: 7, kind: output, shape index: {}]
  %s8 = sld [smem:[#allocation0]]
  $region38: #{tpu_custom_call.1} parent=0
    _
  %s10 = ssub.s32 1, %s8
  %s11 = scalar_select 0, %s10, %s8
  %12 = sst [smem:[#allocation2]] %s6
  $region1: #{tpu_custom_call.1} parent=0
    #allocation3 [shape = 'u8[512]{0}', space=vmem, size = 0x400, scoped, tag = 'output window, operand 0, single buffered']
    #allocation4 [shape = 's32[1]{0}', space=sflag, size = 0x4, scoped, tag = 'scoped memory for tpu_custom_call.1']
    %13 = vsyncpa [#allocation4], 0
    // Predicated region
    $region2: #{tpu_custom_call.1} parent=1 // pred_check
      _
    $region3: #{tpu_custom_call.1} parent=1 // pred_check_branch
      %15 = sbr.rel (0) target = $region5
    $region4: #{tpu_custom_call.1} parent=1 // pred_region
      _
    $region5: #{tpu_custom_call.1} parent=1 // pred_fallthru
      _
    // Predicated region
    $region6: #{tpu_custom_call.1} parent=1 // pred_check
      _
    $region7: #{tpu_custom_call.1} parent=1 // pred_check_branch
      %17 = sbr.rel (0) target = $region9
    $region8: #{tpu_custom_call.1} parent=1 // pred_region
      _
    $region9: #{tpu_custom_call.1} parent=1 // pred_fallthru
      _
    // Predicated region
    $region10: #{tpu_custom_call.1} parent=1 // pred_check
      _
    $region11: #{tpu_custom_call.1} parent=1 // pred_check_branch
      %19 = sbr.rel (0) target = $region13
    $region12: #{tpu_custom_call.1} parent=1 // pred_region
      _
    $region13: #{tpu_custom_call.1} parent=1 // pred_fallthru
      _
    // Predicated region
    $region14: #{tpu_custom_call.1} parent=1 // pred_check
      _
    $region15: #{tpu_custom_call.1} parent=1 // pred_check_branch
      %21 = sbr.rel (0) target = $region17
    $region16: #{tpu_custom_call.1} parent=1 // pred_region
      _
    $region17: #{tpu_custom_call.1} parent=1 // pred_fallthru
      _
    // Predicated region
    $region18: #{tpu_custom_call.1} parent=1 // pred_check
      _
    $region19: #{tpu_custom_call.1} parent=1 // pred_check_branch
      %23 = sbr.rel (0) target = $region21
    $region20: #{tpu_custom_call.1} parent=1 // pred_region
      _
    $region21: #{tpu_custom_call.1} parent=1 // pred_fallthru
      _
    // Predicated region
    $region22: #{tpu_custom_call.1} parent=1 // pred_check
      _
    $region23: #{tpu_custom_call.1} parent=1 // pred_check_branch
      %25 = sbr.rel (0) target = $region25
    $region24: #{tpu_custom_call.1} parent=1 // pred_region
      _
    $region25: #{tpu_custom_call.1} parent=1 // pred_fallthru
      _
    // Predicated region
    $region26: #{tpu_custom_call.1} parent=1 // pred_check
      _
    $region27: #{tpu_custom_call.1} parent=1 // pred_check_branch
      %27 = sbr.rel (0) target = $region29
    $region28: #{tpu_custom_call.1} parent=1 // pred_region
      _
    $region29: #{tpu_custom_call.1} parent=1 // pred_fallthru
      _
    %v29 = vld [vmem:[%s0] sm:$0xff]
    %v30 = vld [vmem:[%s0 + $0x8] sm:$0xff]
    %v31 = vld [vmem:[%s0 + $0x10] sm:$0xff]
    %v32 = vld [vmem:[%s0 + $0x18] sm:$0xff]
    %v33 = vld [vmem:[%s0 + $0x20] sm:$0xff]
    %34 = vxpose.xlu0.b32.start [1/16] %v29, 128
    %35 = vxpose.xlu0.b32.cont [2/16] %v30, 128
    %36 = vxpose.xlu0.b32.cont [3/16] %v31, 128
    %37 = vxpose.xlu0.b32.cont [4/16] %v32, 128
    %38 = vxpose.xlu0.b32.cont [5/16] %v33, 128
    %39 = vxpose.xlu0.b32.cont [6/16] 0.0, 128
    %40 = vxpose.xlu0.b32.cont [7/16] 0.0, 128
    %41 = vxpose.xlu0.b32.cont [8/16] 0.0, 128
    %42 = vxpose.xlu0.b32.cont [9/16] 0.0, 128
    %43 = vxpose.xlu0.b32.cont [10/16] 0.0, 128
    %44 = vxpose.xlu0.b32.cont [11/16] 0.0, 128
    %45 = vxpose.xlu0.b32.cont [12/16] 0.0, 128
    %46 = vxpose.xlu0.b32.cont [13/16] 0.0, 128
    %47 = vxpose.xlu0.b32.cont [14/16] 0.0, 128
    %48 = vxpose.xlu0.b32.cont [15/16] 0.0, 128
    %49 = vxpose.xlu0.b32.end [16/16] 0.0, 128
    %v50 = vpop.trf.xlu0
    %v51 = vpop.trf.xlu0
    %v52 = vpop.trf.xlu0
    %v53 = vpop.trf.xlu0
    %v54 = vpop.trf.xlu0
    %v55 = vpop.trf.xlu0
    %v56 = vpop.trf.xlu0
    %v57 = vpop.trf.xlu0
    %v58 = vpop.trf.xlu0
    %v59 = vpop.trf.xlu0
    %v60 = vpop.trf.xlu0
    %v61 = vpop.trf.xlu0
    %v62 = vpop.trf.xlu0
    %v63 = vpop.trf.xlu0
    %v64 = vpop.trf.xlu0
    %v65 = vpop.trf.xlu0
    %v66 = vpack.c.bf16 %v51, %v50
    %v67 = vld [vmem:[%s1] sm:$0xf]
    %v68 = vld [vmem:[%s1 + $0x4] sm:$0xf]
    %v69 = vld [vmem:[%s1 + $0x8] sm:$0xf]
    %v70 = vld [vmem:[%s1 + $0xc] sm:$0xf]
    %v71 = vld [vmem:[%s1 + $0x10] sm:$0xf]
    %v72 = vld [vmem:[%s1 + $0x14] sm:$0xf]
    %v73 = vld [vmem:[%s1 + $0x18] sm:$0xf]
    %v74 = vld [vmem:[%s1 + $0x1c] sm:$0xf]
    %v75 = vld [vmem:[%s1 + $0x20] sm:$0xf]
    %v76 = vld [vmem:[%s1 + $0x24] sm:$0xf]
    %v77 = vld [vmem:[%s1 + $0x28] sm:$0xf]
    %v78 = vld [vmem:[%s1 + $0x2c] sm:$0xf]
    %v79 = vld [vmem:[%s1 + $0x30] sm:$0xf]
    %v80 = vld [vmem:[%s1 + $0x34] sm:$0xf]
    %v81 = vld [vmem:[%s1 + $0x38] sm:$0xf]
    %v82 = vld [vmem:[%s1 + $0x3c] sm:$0xf]
    %v83 = vld [vmem:[%s2] sm:$0xff]
    %v84 = vld [vmem:[%s2 + $0x8] sm:$0xff]
    %v85 = vld [vmem:[%s2 + $0x10] sm:$0xff]
    %v86 = vld [vmem:[%s2 + $0x18] sm:$0xff]
    %v87 = vld [vmem:[%s2 + $0x20] sm:$0xff]
    %v88 = vld [vmem:[%s2 + $0x28] sm:$0xff]
    %v89 = vld [vmem:[%s2 + $0x30] sm:$0xff]
    %v90 = vld [vmem:[%s2 + $0x38] sm:$0xff]
    %v91 = vld [vmem:[%s2 + $0x40] sm:$0xff]
    %v92 = vld [vmem:[%s2 + $0x48] sm:$0xff]
    %v93 = vld [vmem:[%s2 + $0x50] sm:$0xff]
    %v94 = vld [vmem:[%s2 + $0x58] sm:$0xff]
    %v95 = vld [vmem:[%s2 + $0x60] sm:$0xff]
    %v96 = vld [vmem:[%s2 + $0x68] sm:$0xff]
    %v97 = vld [vmem:[%s2 + $0x70] sm:$0xff]
    %v98 = vld [vmem:[%s2 + $0x78] sm:$0xff]
    %100 = vset.pattern.permute.xlu0 0
    %101 = vperm.xlu0 %100, %v83
    %v102 = vpop.permute.xlu0 %101
    %105 = vset.pattern.permute.xlu0 0
    %106 = vperm.xlu0 %105, %v84
    %v107 = vpop.permute.xlu0 %106
    %110 = vset.pattern.permute.xlu0 0
    %111 = vperm.xlu0 %110, %v85
    %v112 = vpop.permute.xlu0 %111
    %115 = vset.pattern.permute.xlu0 0
    %116 = vperm.xlu0 %115, %v86
    %v117 = vpop.permute.xlu0 %116
    %120 = vset.pattern.permute.xlu0 0
    %121 = vperm.xlu0 %120, %v87
    %v122 = vpop.permute.xlu0 %121
    %125 = vset.pattern.permute.xlu0 0
    %126 = vperm.xlu0 %125, %v88
    %v127 = vpop.permute.xlu0 %126
    %130 = vset.pattern.permute.xlu0 0
    %131 = vperm.xlu0 %130, %v89
    %v132 = vpop.permute.xlu0 %131
    %135 = vset.pattern.permute.xlu0 0
    %136 = vperm.xlu0 %135, %v90
    %v137 = vpop.permute.xlu0 %136
    %140 = vset.pattern.permute.xlu0 0
    %141 = vperm.xlu0 %140, %v91
    %v142 = vpop.permute.xlu0 %141
    %145 = vset.pattern.permute.xlu0 0
    %146 = vperm.xlu0 %145, %v92
    %v147 = vpop.permute.xlu0 %146
    %150 = vset.pattern.permute.xlu0 0
    %151 = vperm.xlu0 %150, %v93
    %v152 = vpop.permute.xlu0 %151
    %155 = vset.pattern.permute.xlu0 0
    %156 = vperm.xlu0 %155, %v94
    %v157 = vpop.permute.xlu0 %156
    %160 = vset.pattern.permute.xlu0 0
    %161 = vperm.xlu0 %160, %v95
    %v162 = vpop.permute.xlu0 %161
    %165 = vset.pattern.permute.xlu0 0
    %166 = vperm.xlu0 %165, %v96
    %v167 = vpop.permute.xlu0 %166
    %170 = vset.pattern.permute.xlu0 0
    %171 = vperm.xlu0 %170, %v97
    %v172 = vpop.permute.xlu0 %171
    %175 = vset.pattern.permute.xlu0 0
    %176 = vperm.xlu0 %175, %v98
    %v177 = vpop.permute.xlu0 %176
    %v195 = vunpack.c.l.b16 %v67
    %v196 = vunpack.c.l.b16 %v68
    %v197 = vunpack.c.l.b16 %v69
    %v198 = vunpack.c.l.b16 %v70
    %v199 = vunpack.c.l.b16 %v71
    %v200 = vunpack.c.l.b16 %v72
    %v201 = vunpack.c.l.b16 %v73
    %v202 = vunpack.c.l.b16 %v74
    %v203 = vunpack.c.l.b16 %v75
    %v204 = vunpack.c.l.b16 %v76
    %v205 = vunpack.c.l.b16 %v77
    %v206 = vunpack.c.l.b16 %v78
    %v207 = vunpack.c.l.b16 %v79
    %v208 = vunpack.c.l.b16 %v80
    %v209 = vunpack.c.l.b16 %v81
    %v210 = vunpack.c.l.b16 %v82
    %v211 = vpack.c.b16 %v196, %v195
    %v212 = vpack.c.b16 %v198, %v197
    %v213 = vpack.c.b16 %v200, %v199
    %v214 = vpack.c.b16 %v202, %v201
    %v215 = vpack.c.b16 %v204, %v203
    %v216 = vpack.c.b16 %v206, %v205
    %v217 = vpack.c.b16 %v208, %v207
    %v218 = vpack.c.b16 %v210, %v209
    %vm219 = vcmask 130048
    %v221 = vsel %vm219, %v211, 0
    %v224 = vsel %vm219, %v212, 0
    %v227 = vsel %vm219, %v213, 0
    %v230 = vsel %vm219, %v214, 0
    %v233 = vsel %vm219, %v215, 0
    %v236 = vsel %vm219, %v216, 0
    %v239 = vsel %vm219, %v217, 0
    %v242 = vsel %vm219, %v218, 0
    %244 = vmatpush.bf16.msra.mxu0 0
    %245 = vmatpush.bf16.msra.mxu0 0
    %246 = vmatpush.bf16.msra.mxu0 0
    %247 = vmatpush.bf16.msra.mxu0 0
    %248 = vmatpush.bf16.msra.mxu0 0
    %249 = vmatpush.bf16.msra.mxu0 0
    %250 = vmatpush.bf16.msra.mxu0 0
    %251 = vmatpush.bf16.msra.mxu0 %v66
    %252 = vmatmul.bf16.gmra.mxu0 %v221
    %v253 = vpop.f32.mrf.mxu0
    %v254 = vadd.f32 %v102, %v253
    %v255 = vpop.f32.mrf.mxu0
    %v256 = vadd.f32 %v107, %v255
    %257 = vmatmul.bf16.gmra.mxu0 %v224
    %v258 = vpop.f32.mrf.mxu0
    %v259 = vadd.f32 %v112, %v258
    %v260 = vpop.f32.mrf.mxu0
    %v261 = vadd.f32 %v117, %v260
    %262 = vmatmul.bf16.gmra.mxu0 %v227
    %v263 = vpop.f32.mrf.mxu0
    %v264 = vadd.f32 %v122, %v263
    %v265 = vpop.f32.mrf.mxu0
    %v266 = vadd.f32 %v127, %v265
    %267 = vmatmul.bf16.gmra.mxu0 %v230
    %v268 = vpop.f32.mrf.mxu0
    %v269 = vadd.f32 %v132, %v268
    %v270 = vpop.f32.mrf.mxu0
    %v271 = vadd.f32 %v137, %v270
    %272 = vmatmul.bf16.gmra.mxu0 %v233
    %v273 = vpop.f32.mrf.mxu0
    %v274 = vadd.f32 %v142, %v273
    %v275 = vpop.f32.mrf.mxu0
    %v276 = vadd.f32 %v147, %v275
    %277 = vmatmul.bf16.gmra.mxu0 %v236
    %v278 = vpop.f32.mrf.mxu0
    %v279 = vadd.f32 %v152, %v278
    %v280 = vpop.f32.mrf.mxu0
    %v281 = vadd.f32 %v157, %v280
    %282 = vmatmul.bf16.gmra.mxu0 %v239
    %v283 = vpop.f32.mrf.mxu0
    %v284 = vadd.f32 %v162, %v283
    %v285 = vpop.f32.mrf.mxu0
    %v286 = vadd.f32 %v167, %v285
    %287 = vmatmul.bf16.gmra.mxu0 %v242
    %v288 = vpop.f32.mrf.mxu0
    %v289 = vadd.f32 %v172, %v288
    %v290 = vpop.f32.mrf.mxu0
    %v291 = vadd.f32 %v177, %v290
    %292 = vdwg.mxu0
    %v293 = vtanh.pop %v254
    %v294 = vtanh.pop %v256
    %v295 = vtanh.pop %v259
    %v296 = vtanh.pop %v261
    %v297 = vtanh.pop %v264
    %v298 = vtanh.pop %v266
    %v299 = vtanh.pop %v269
    %v300 = vtanh.pop %v271
    %v301 = vtanh.pop %v274
    %v302 = vtanh.pop %v276
    %v303 = vtanh.pop %v279
    %v304 = vtanh.pop %v281
    %v305 = vtanh.pop %v284
    %v306 = vtanh.pop %v286
    %v307 = vtanh.pop %v289
    %v308 = vtanh.pop %v291
    %v309 = vpack.c.bf16 %v294, %v293
    %v310 = vpack.c.bf16 %v296, %v295
    %v311 = vpack.c.bf16 %v298, %v297
    %v312 = vpack.c.bf16 %v300, %v299
    %v313 = vpack.c.bf16 %v302, %v301
    %v314 = vpack.c.bf16 %v304, %v303
    %v315 = vpack.c.bf16 %v306, %v305
    %v316 = vpack.c.bf16 %v308, %v307
    %v317 = vld [vmem:[%s3] sm:$0xf]
    %v318 = vld [vmem:[%s3 + $0x4] sm:$0xf]
    %v319 = vld [vmem:[%s3 + $0x8] sm:$0xf]
    %v320 = vld [vmem:[%s3 + $0xc] sm:$0xf]
    %v321 = vld [vmem:[%s3 + $0x10] sm:$0xf]
    %v322 = vld [vmem:[%s3 + $0x14] sm:$0xf]
    %v323 = vld [vmem:[%s3 + $0x18] sm:$0xf]
    %v324 = vld [vmem:[%s3 + $0x1c] sm:$0xf]
    %v325 = vld [vmem:[%s3 + $0x20] sm:$0xf]
    %v326 = vld [vmem:[%s3 + $0x24] sm:$0xf]
    %v327 = vld [vmem:[%s3 + $0x28] sm:$0xf]
    %v328 = vld [vmem:[%s3 + $0x2c] sm:$0xf]
    %v329 = vld [vmem:[%s3 + $0x30] sm:$0xf]
    %v330 = vld [vmem:[%s3 + $0x34] sm:$0xf]
    %v331 = vld [vmem:[%s3 + $0x38] sm:$0xf]
    %v332 = vld [vmem:[%s3 + $0x3c] sm:$0xf]
    %v333 = vld [vmem:[%s4] sm:$0xff]
    %v334 = vld [vmem:[%s4 + $0x8] sm:$0xff]
    %v335 = vld [vmem:[%s4 + $0x10] sm:$0xff]
    %v336 = vld [vmem:[%s4 + $0x18] sm:$0xff]
    %v337 = vld [vmem:[%s4 + $0x20] sm:$0xff]
    %v338 = vld [vmem:[%s4 + $0x28] sm:$0xff]
    %v339 = vld [vmem:[%s4 + $0x30] sm:$0xff]
    %v340 = vld [vmem:[%s4 + $0x38] sm:$0xff]
    %v341 = vld [vmem:[%s4 + $0x40] sm:$0xff]
    %v342 = vld [vmem:[%s4 + $0x48] sm:$0xff]
    %v343 = vld [vmem:[%s4 + $0x50] sm:$0xff]
    %v344 = vld [vmem:[%s4 + $0x58] sm:$0xff]
    %v345 = vld [vmem:[%s4 + $0x60] sm:$0xff]
    %v346 = vld [vmem:[%s4 + $0x68] sm:$0xff]
    %v347 = vld [vmem:[%s4 + $0x70] sm:$0xff]
    %v348 = vld [vmem:[%s4 + $0x78] sm:$0xff]
    %350 = vset.pattern.permute.xlu0 0
    %351 = vperm.xlu0 %350, %v333
    %v352 = vpop.permute.xlu0 %351
    %355 = vset.pattern.permute.xlu0 0
    %356 = vperm.xlu0 %355, %v334
    %v357 = vpop.permute.xlu0 %356
    %360 = vset.pattern.permute.xlu0 0
    %361 = vperm.xlu0 %360, %v335
    %v362 = vpop.permute.xlu0 %361
    %365 = vset.pattern.permute.xlu0 0
    %366 = vperm.xlu0 %365, %v336
    %v367 = vpop.permute.xlu0 %366
    %370 = vset.pattern.permute.xlu0 0
    %371 = vperm.xlu0 %370, %v337
    %v372 = vpop.permute.xlu0 %371
    %375 = vset.pattern.permute.xlu0 0
    %376 = vperm.xlu0 %375, %v338
    %v377 = vpop.permute.xlu0 %376
    %380 = vset.pattern.permute.xlu0 0
    %381 = vperm.xlu0 %380, %v339
    %v382 = vpop.permute.xlu0 %381
    %385 = vset.pattern.permute.xlu0 0
    %386 = vperm.xlu0 %385, %v340
    %v387 = vpop.permute.xlu0 %386
    %390 = vset.pattern.permute.xlu0 0
    %391 = vperm.xlu0 %390, %v341
    %v392 = vpop.permute.xlu0 %391
    %395 = vset.pattern.permute.xlu0 0
    %396 = vperm.xlu0 %395, %v342
    %v397 = vpop.permute.xlu0 %396
    %400 = vset.pattern.permute.xlu0 0
    %401 = vperm.xlu0 %400, %v343
    %v402 = vpop.permute.xlu0 %401
    %405 = vset.pattern.permute.xlu0 0
    %406 = vperm.xlu0 %405, %v344
    %v407 = vpop.permute.xlu0 %406
    %410 = vset.pattern.permute.xlu0 0
    %411 = vperm.xlu0 %410, %v345
    %v412 = vpop.permute.xlu0 %411
    %415 = vset.pattern.permute.xlu0 0
    %416 = vperm.xlu0 %415, %v346
    %v417 = vpop.permute.xlu0 %416
    %420 = vset.pattern.permute.xlu0 0
    %421 = vperm.xlu0 %420, %v347
    %v422 = vpop.permute.xlu0 %421
    %425 = vset.pattern.permute.xlu0 0
    %426 = vperm.xlu0 %425, %v348
    %v427 = vpop.permute.xlu0 %426
    %v445 = vunpack.c.l.b16 %v317
    %v446 = vunpack.c.l.b16 %v318
    %v447 = vunpack.c.l.b16 %v319
    %v448 = vunpack.c.l.b16 %v320
    %v449 = vunpack.c.l.b16 %v321
    %v450 = vunpack.c.l.b16 %v322
    %v451 = vunpack.c.l.b16 %v323
    %v452 = vunpack.c.l.b16 %v324
    %v453 = vunpack.c.l.b16 %v325
    %v454 = vunpack.c.l.b16 %v326
    %v455 = vunpack.c.l.b16 %v327
    %v456 = vunpack.c.l.b16 %v328
    %v457 = vunpack.c.l.b16 %v329
    %v458 = vunpack.c.l.b16 %v330
    %v459 = vunpack.c.l.b16 %v331
    %v460 = vunpack.c.l.b16 %v332
    %v461 = vpack.c.b16 %v446, %v445
    %v462 = vpack.c.b16 %v448, %v447
    %v463 = vpack.c.b16 %v450, %v449
    %v464 = vpack.c.b16 %v452, %v451
    %v465 = vpack.c.b16 %v454, %v453
    %v466 = vpack.c.b16 %v456, %v455
    %v467 = vpack.c.b16 %v458, %v457
    %v468 = vpack.c.b16 %v460, %v459
    %477 = vmatpush.bf16.msra.mxu0 %v316
    %478 = vmatpush.bf16.msra.mxu0 %v315
    %479 = vmatpush.bf16.msra.mxu0 %v314
    %480 = vmatpush.bf16.msra.mxu0 %v313
    %481 = vmatpush.bf16.msra.mxu0 %v312
    %482 = vmatpush.bf16.msra.mxu0 %v311
    %483 = vmatpush.bf16.msra.mxu0 %v310
    %484 = vmatpush.bf16.msra.mxu0 %v309
    %485 = vmatmul.bf16.gmra.mxu0 %v461
    %v486 = vpop.f32.mrf.mxu0
    %v487 = vadd.f32 %v352, %v486
    %v488 = vpop.f32.mrf.mxu0
    %v489 = vadd.f32 %v357, %v488
    %490 = vmatmul.bf16.gmra.mxu0 %v462
    %v491 = vpop.f32.mrf.mxu0
    %v492 = vadd.f32 %v362, %v491
    %v493 = vpop.f32.mrf.mxu0
    %v494 = vadd.f32 %v367, %v493
    %495 = vmatmul.bf16.gmra.mxu0 %v463
    %v496 = vpop.f32.mrf.mxu0
    %v497 = vadd.f32 %v372, %v496
    %v498 = vpop.f32.mrf.mxu0
    %v499 = vadd.f32 %v377, %v498
    %500 = vmatmul.bf16.gmra.mxu0 %v464
    %v501 = vpop.f32.mrf.mxu0
    %v502 = vadd.f32 %v382, %v501
    %v503 = vpop.f32.mrf.mxu0
    %v504 = vadd.f32 %v387, %v503
    %505 = vmatmul.bf16.gmra.mxu0 %v465
    %v506 = vpop.f32.mrf.mxu0
    %v507 = vadd.f32 %v392, %v506
    %v508 = vpop.f32.mrf.mxu0
    %v509 = vadd.f32 %v397, %v508
    %510 = vmatmul.bf16.gmra.mxu0 %v466
    %v511 = vpop.f32.mrf.mxu0
    %v512 = vadd.f32 %v402, %v511
    %v513 = vpop.f32.mrf.mxu0
    %v514 = vadd.f32 %v407, %v513
    %515 = vmatmul.bf16.gmra.mxu0 %v467
    %v516 = vpop.f32.mrf.mxu0
    %v517 = vadd.f32 %v412, %v516
    %v518 = vpop.f32.mrf.mxu0
    %v519 = vadd.f32 %v417, %v518
    %520 = vmatmul.bf16.gmra.mxu0 %v468
    %v521 = vpop.f32.mrf.mxu0
    %v522 = vadd.f32 %v422, %v521
    %v523 = vpop.f32.mrf.mxu0
    %v524 = vadd.f32 %v427, %v523
    %525 = vdwg.mxu0
    %v526 = vtanh.pop %v487
    %v527 = vtanh.pop %v489
    %v528 = vtanh.pop %v492
    %v529 = vtanh.pop %v494
    %v530 = vtanh.pop %v497
    %v531 = vtanh.pop %v499
    %v532 = vtanh.pop %v502
    %v533 = vtanh.pop %v504
    %v534 = vtanh.pop %v507
    %v535 = vtanh.pop %v509
    %v536 = vtanh.pop %v512
    %v537 = vtanh.pop %v514
    %v538 = vtanh.pop %v517
    %v539 = vtanh.pop %v519
    %v540 = vtanh.pop %v522
    %v541 = vtanh.pop %v524
    %v542 = vpack.c.bf16 %v527, %v526
    %v543 = vpack.c.bf16 %v529, %v528
    %v544 = vpack.c.bf16 %v531, %v530
    %v545 = vpack.c.bf16 %v533, %v532
    %v546 = vpack.c.bf16 %v535, %v534
    %v547 = vpack.c.bf16 %v537, %v536
    %v548 = vpack.c.bf16 %v539, %v538
    %v549 = vpack.c.bf16 %v541, %v540
    %v550 = vld [vmem:[%s5] sm:$0x1]
    %s551 = sld [smem:[#allocation2]]
    %v552 = vstv %s551
    %553 = vmatpush.bf16.msra.mxu0 %v549
    %554 = vmatpush.bf16.msra.mxu0 %v548
    %555 = vmatpush.bf16.msra.mxu0 %v547
    %556 = vmatpush.bf16.msra.mxu0 %v546
    %557 = vmatpush.bf16.msra.mxu0 %v545
    %558 = vmatpush.bf16.msra.mxu0 %v544
    %559 = vmatpush.bf16.msra.mxu0 %v543
    %560 = vmatpush.bf16.msra.mxu0 %v542
    %561 = vmatmul.bf16.gmra.mxu0 %v550
    %v562 = vpop.f32.mrf.mxu0
    %v563 = vadd.f32 %v552, %v562
    %v564 = vpop.f32.mrf.mxu0
    %565 = vdwg.mxu0
    %vm566 = vcmask 319488
    %567 = vst.msk [vmem:[#allocation3] sm:$0x1] %vm566, %v563
    // Predicated region
    $region30: #{tpu_custom_call.1} parent=1 // pred_check
      _
    $region31: #{tpu_custom_call.1} parent=1 // pred_check_branch
      %569 = sbr.rel (0) target = $region33
    $region32: #{tpu_custom_call.1} parent=1 // pred_region
      %571 = vsyncadd [#allocation4], 0
      %s573 = sshll.u32 [#allocation3], 4
      %s574 = int_to_ptr.vmem [resolvable:$true] %s573
      %s575 = sshll.u32 %s7, 4
      %s576 = int_to_ptr.hbm [resolvable:$true] %s575
      %578 = dma.vmem_to_hbm [thread:$0]  %s574, 16, %s576, [#allocation4]
    $region33: #{tpu_custom_call.1} parent=1 // pred_fallthru
      _
    // Predicated region
    $region34: #{tpu_custom_call.1} parent=1 // pred_check
      _
    $region35: #{tpu_custom_call.1} parent=1 // pred_check_branch
      %580 = sbr.rel (0) target = $region37
    $region36: #{tpu_custom_call.1} parent=1 // pred_region
      %582 = dma.done [#allocation4], 16
    $region37: #{tpu_custom_call.1} parent=1 // pred_fallthru
      _
    %583 = vsyncpa [#allocation4], 1

</llo_original>
